<compile_context>
chip_gen: v6e
topology: v6e:2x2x1
jax: 0.10.0
libtpu: 0.0.40
codegen_flags: <defaults>
</compile_context>

<pallas_src>
import functools

import jax
import jax.numpy as jnp
from jax.experimental import pallas as pl
from jax.experimental.pallas import tpu as pltpu

LATENT_DIM = 256      # HECFConfig.latent_dim (lane-aligned: 2 x 128 lanes)
NUM_O2 = 4            # number of O_2 latent tensors handed over by Layer 2
NUM_SCENARIOS = 3     # forward(..., num_scenarios=3)


def _make_pool_kernel(n: int):
    """Kernel over N separate (1, D) refs -> (1, D) mean, unrolled on the VPU."""
    inv_n = 1.0 / float(n)

    def kernel(*refs):
        out_ref = refs[-1]
        in_refs = refs[:-1]
        # Statically unrolled add chain (N-1 vadd + 1 vmul on the VPU);
        # accumulate in f32 regardless of input dtype.
        acc = in_refs[0][...].astype(jnp.float32)
        for r in in_refs[1:]:
            acc = acc + r[...].astype(jnp.float32)
        out_ref[...] = (acc * inv_n).astype(out_ref.dtype)

    return kernel


@functools.partial(jax.jit, static_argnames=())
def layer3_pool(*o2_vectors):
    """Pallas mean-pool of the O_2 latents (no stack materialization).

    Each o2_vector is a (latent_dim,) array; they are reshaped (free) to
    (1, latent_dim) VMEM blocks.  Grid-less single-tile kernel.
    """
    n = len(o2_vectors)
    d = o2_vectors[0].shape[-1]
    dtype = o2_vectors[0].dtype
    inputs = [v.reshape(1, d) for v in o2_vectors]

    bytes_per_elem = jnp.dtype(dtype).itemsize
    cost = pl.CostEstimate(
        flops=n * d,                       # N-1 adds + 1 scale ≈ N*D
        transcendentals=0,
        bytes_accessed=(n + 1) * d * bytes_per_elem,
    )

    return pl.pallas_call(
        _make_pool_kernel(n),
        out_shape=jax.ShapeDtypeStruct((1, d), dtype),
        in_specs=[pl.BlockSpec(memory_space=pltpu.MemorySpace.VMEM)] * n,
        out_specs=pl.BlockSpec(memory_space=pltpu.MemorySpace.VMEM),
        cost_estimate=cost,
        compiler_params=pltpu.CompilerParams(vmem_limit_bytes=2 * 1024 * 1024),
    )(*inputs)


def layer3_forward(o2_list, concepts, input_text, num_scenarios=NUM_SCENARIOS):
    """JAX/Pallas analogue of Layer3.forward.

    o2_list : list of (latent_dim,) arrays — the O_2 latents from Layer 2.
    Returns (conditioning_vector (1, latent_dim), list[str] scenarios).
    """
    cond = layer3_pool(*o2_list)

    # TODO(synk): openai.chat.completions.create (gpt-3.5-turbo text generation)
    # has no Pallas/TPU-kernel equivalent; emitting deterministic placeholder
    # scenario strings instead of a live LLM call.
    scenarios = [
        f"scenario_{i}: hypothetical continuation of '{input_text}' "
        f"exploring concepts {list(concepts)}"
        for i in range(num_scenarios)
    ]
    return cond, scenarios


if __name__ == "__main__":
    key = jax.random.PRNGKey(0)
    # Deterministic synthetic O_2 list (as Layer 2 would hand over).
    o2_list = [
        jax.random.normal(jax.random.fold_in(key, i), (LATENT_DIM,), jnp.float32)
        for i in range(NUM_O2)
    ]

    concepts = ["curiosity", "entropy", "memory"]
    input_text = "the explorer found a sealed door beneath the ice"

    cond, scenarios = layer3_forward(o2_list, concepts, input_text)
    cond = jax.block_until_ready(cond)

    # Sanity: Pallas mean-pool matches plain JAX mean over the stacked list.
    ref = jnp.mean(jnp.stack(o2_list, axis=0), axis=0, keepdims=True)
    assert cond.shape == (1, LATENT_DIM)
    assert jnp.allclose(cond, ref, atol=1e-6)
    assert len(scenarios) == NUM_SCENARIOS

    print("KERNEL_OK")
</pallas_src>

<mosaic_0001>
module attributes {stable_mosaic.version = 11 : i64} {
  func.func @kernel(%arg0: memref<1x256xf32, #tpu.memory_space<vmem>>, %arg1: memref<1x256xf32, #tpu.memory_space<vmem>>, %arg2: memref<1x256xf32, #tpu.memory_space<vmem>>, %arg3: memref<1x256xf32, #tpu.memory_space<vmem>>, %arg4: memref<1x256xf32, #tpu.memory_space<vmem>>) attributes {dimension_semantics = [], scalar_prefetch = 0 : i64, scratch_operands = 0 : i64, tpu.core_type = #tpu.core_type<tc>} {
    %c0 = arith.constant 0 : index
    %c0_0 = arith.constant 0 : index
    %0 = vector.load %arg0[%c0, %c0_0] : memref<1x256xf32, #tpu.memory_space<vmem>>, vector<1x256xf32>
    %c0_1 = arith.constant 0 : index
    %c0_2 = arith.constant 0 : index
    %1 = vector.load %arg1[%c0_1, %c0_2] : memref<1x256xf32, #tpu.memory_space<vmem>>, vector<1x256xf32>
    %2 = arith.addf %0, %1 : vector<1x256xf32>
    %c0_3 = arith.constant 0 : index
    %c0_4 = arith.constant 0 : index
    %3 = vector.load %arg2[%c0_3, %c0_4] : memref<1x256xf32, #tpu.memory_space<vmem>>, vector<1x256xf32>
    %4 = arith.addf %2, %3 : vector<1x256xf32>
    %c0_5 = arith.constant 0 : index
    %c0_6 = arith.constant 0 : index
    %5 = vector.load %arg3[%c0_5, %c0_6] : memref<1x256xf32, #tpu.memory_space<vmem>>, vector<1x256xf32>
    %6 = arith.addf %4, %5 : vector<1x256xf32>
    %cst = arith.constant 2.500000e-01 : f32
    %7 = vector.broadcast %cst : f32 to vector<1x256xf32>
    %8 = arith.mulf %6, %7 : vector<1x256xf32>
    %c0_7 = arith.constant 0 : index
    %c0_8 = arith.constant 0 : index
    %9 = vector.load %arg4[%c0_7, %c0_8] : memref<1x256xf32, #tpu.memory_space<vmem>>, vector<1x256xf32>
    tpu.vector_store %arg4[%c0_7, %c0_8], %8 {strides = array<i32>} : memref<1x256xf32, #tpu.memory_space<vmem>>, vector<1x256xf32>,
    return
  }
}

</mosaic_0001>

<llo_original>
// kernel: layer3_pool.1
$region0: #{layer3_pool.1}
  #allocation0 [shape = 'u32[]', space=smem, size = 0x4, offset = 0x4, fixed_abs, tag = 'smem constant byte address 0x4 - core index']
  #allocation1 [shape = 'u32[144,128]{1,0:T(1,128)}', space=vmem, size = 0x12000, scoped, tag = 'internal scratch']
  %s0 = inlined_call_operand.vmem [shape: f32[1,256], index: 0, kind: input, shape index: {}]
  %s1 = inlined_call_operand.vmem [shape: f32[1,256], index: 1, kind: input, shape index: {}]
  %s2 = inlined_call_operand.vmem [shape: f32[1,256], index: 2, kind: input, shape index: {}]
  %s3 = inlined_call_operand.vmem [shape: f32[1,256], index: 3, kind: input, shape index: {}]
  %s4 = inlined_call_operand.hbm [shape: f32[1,256], index: 4, kind: output, shape index: {}]
  %s5 = sld [smem:[#allocation0]]
  $region26: #{layer3_pool.1} parent=0
    _
  %s7 = ssub.s32 1, %s5
  %s8 = scalar_select 0, %s7, %s5
  $region1: #{layer3_pool.1} parent=0
    #allocation2 [shape = 'u8[1024]{0}', space=vmem, size = 0x400, scoped, tag = 'output window, operand 0, single buffered']
    #allocation3 [shape = 's32[1]{0}', space=sflag, size = 0x4, scoped, tag = 'scoped memory for layer3_pool.1']
    %9 = vsyncpa [#allocation3], 0
    // Predicated region
    $region2: #{layer3_pool.1} parent=1 // pred_check
      _
    $region3: #{layer3_pool.1} parent=1 // pred_check_branch
      %11 = sbr.rel (0) target = $region5
    $region4: #{layer3_pool.1} parent=1 // pred_region
      _
    $region5: #{layer3_pool.1} parent=1 // pred_fallthru
      _
    // Predicated region
    $region6: #{layer3_pool.1} parent=1 // pred_check
      _
    $region7: #{layer3_pool.1} parent=1 // pred_check_branch
      %13 = sbr.rel (0) target = $region9
    $region8: #{layer3_pool.1} parent=1 // pred_region
      _
    $region9: #{layer3_pool.1} parent=1 // pred_fallthru
      _
    // Predicated region
    $region10: #{layer3_pool.1} parent=1 // pred_check
      _
    $region11: #{layer3_pool.1} parent=1 // pred_check_branch
      %15 = sbr.rel (0) target = $region13
    $region12: #{layer3_pool.1} parent=1 // pred_region
      _
    $region13: #{layer3_pool.1} parent=1 // pred_fallthru
      _
    // Predicated region
    $region14: #{layer3_pool.1} parent=1 // pred_check
      _
    $region15: #{layer3_pool.1} parent=1 // pred_check_branch
      %17 = sbr.rel (0) target = $region17
    $region16: #{layer3_pool.1} parent=1 // pred_region
      _
    $region17: #{layer3_pool.1} parent=1 // pred_fallthru
      _
    %v18 = vld [vmem:[%s0] sm:$0x3]
    %v19 = vld [vmem:[%s1] sm:$0x3]
    %v20 = vadd.f32 %v18, %v19
    %v21 = vld [vmem:[%s2] sm:$0x3]
    %v22 = vadd.f32 %v20, %v21
    %v23 = vld [vmem:[%s3] sm:$0x3]
    %v24 = vadd.f32 %v22, %v23
    %v25 = vmul.f32 %v24, 0.25
    %v26 = vlaneseq
    %vm27 = vcmp.ge.s32.totalorder %v26, 0
    %vm28 = vcmp.lt.s32.totalorder %v26, 256
    %vm29 = vmand %vm27, %vm28
    %30 = vst.msk [vmem:[#allocation2] sm:$0x3] %vm29, %v25
    // Predicated region
    $region18: #{layer3_pool.1} parent=1 // pred_check
      _
    $region19: #{layer3_pool.1} parent=1 // pred_check_branch
      %32 = sbr.rel (0) target = $region21
    $region20: #{layer3_pool.1} parent=1 // pred_region
      %s34 = ssub.s32 32, 32
      %35 = vsyncadd [#allocation3], %s34
      %s37 = sshll.u32 [#allocation2], 4
      %s38 = int_to_ptr.vmem [resolvable:$true] %s37
      %40 = dma.vmem_to_hbm [thread:$0]  %s38, 32, %s4, [#allocation3]
    $region21: #{layer3_pool.1} parent=1 // pred_fallthru
      _
    // Predicated region
    $region22: #{layer3_pool.1} parent=1 // pred_check
      _
    $region23: #{layer3_pool.1} parent=1 // pred_check_branch
      %42 = sbr.rel (0) target = $region25
    $region24: #{layer3_pool.1} parent=1 // pred_region
      %43 = dma.done [#allocation3], 32
    $region25: #{layer3_pool.1} parent=1 // pred_fallthru
      _
    %44 = vsyncpa [#allocation3], 1

</llo_original>
